<compile_context>
chip_gen: v5e
topology: v5e:2x2
jax: 0.10.0
libtpu: 0.0.40
codegen_flags: <defaults>
</compile_context>

<pallas_src>
import jax
import jax.numpy as jnp
from jax.experimental import pallas as pl
from jax.experimental.pallas import tpu as pltpu

CROP_LO, CROP_HI = 32, 96           # CenterCrop: x[:, :, 32:96, 32:96]
CROP = CROP_HI - CROP_LO            # 64
P = CROP * CROP                     # 4096 flattened crop pixels (lane-dense)


def _pick_tile_n(n_total, max_tile=8192):
    """Largest lane-dense tile (multiple of 128) dividing n_total, preferring
    >= 2 grid steps so v7x megacore can split the grid across both TCs."""
    cands = [c for c in (8192, 4096, 2048, 1024, 512, 256, 128) if c <= max_tile]
    for c in cands:
        if n_total % c == 0 and n_total // c >= 2:
            return c
    for c in cands:
        if n_total % c == 0:
            return c
    return n_total


def ensemble_kernel(x_ref, w_ref, o_ref):
    """One lane tile per grid step (channels-first, batch folded into lanes).

    x_ref: (Cin+1, T)        transport dtype; last row is all-ones (bias input)
    w_ref: (K*Cout, Cin+1)   transport dtype; last column holds the biases
    o_ref: (Cout, T)         f32 ensemble mean
    """
    cout = o_ref.shape[0]
    k_members = w_ref.shape[0] // cout

    # One MXU matmul for all K members; bias fused via ones-row / bias-column.
    y = jnp.dot(w_ref[...], x_ref[...],
                preferred_element_type=jnp.float32)            # (K*Cout, T) f32

    # stack(dim=1).mean(dim=1): sum the K row-groups (K-1 VPU adds), scale 1/K.
    acc = y[0:cout]
    for k in range(1, k_members):
        acc = acc + y[k * cout:(k + 1) * cout]
    o_ref[...] = acc * (1.0 / k_members)


def ensemble_forward(x_nchw, weights, biases, *,
                     transport_dtype=jnp.bfloat16, fold_ensemble=False):
    """x_nchw: (B, Cin, H, W); weights: (K, Cin, Cout); biases: (K, Cout)."""
    B, Cin, H, W = x_nchw.shape
    K, _, Cout = weights.shape
    assert H >= CROP_HI and W >= CROP_HI, "CenterCrop(32:96) needs spatial >= 96"

    if fold_ensemble:
        # Exact only while the member stand-in is linear; breaks once the real
        # nonlinear UNet replaces it -- hence behind a flag, default off.
        weights = weights.mean(axis=0, keepdims=True)
        biases = biases.mean(axis=0, keepdims=True)
        K = 1

    n_total = B * P
    tile_n = _pick_tile_n(n_total)
    grid = (n_total // tile_n,)

    # Crop + channels-first/batch-into-lanes transpose + ones-row (bias input)
    # + transport cast in one expression so XLA fuses it into a single copy.
    # (Crop-before-member-forward is only valid for the pointwise stand-in.)
    xc = x_nchw[:, :, CROP_LO:CROP_HI, CROP_LO:CROP_HI]             # (B, Cin, 64, 64)
    x_cf = jnp.transpose(xc, (1, 0, 2, 3)).reshape(Cin, n_total)    # (Cin, B*P)
    x_aug = jnp.concatenate(
        [x_cf, jnp.ones((1, n_total), x_cf.dtype)], axis=0
    ).astype(transport_dtype)                                        # (Cin+1, B*P)

    # Stacked per-member weights (K*Cout, Cin) with biases fused as a column.
    w_stack = jnp.transpose(weights, (0, 2, 1)).reshape(K * Cout, Cin)
    w_aug = jnp.concatenate(
        [w_stack, biases.reshape(K * Cout, 1)], axis=1
    ).astype(transport_dtype)                                        # (K*Cout, Cin+1)

    out = pl.pallas_call(
        ensemble_kernel,
        out_shape=jax.ShapeDtypeStruct((Cout, n_total), jnp.float32),
        grid_spec=pltpu.PrefetchScalarGridSpec(
            num_scalar_prefetch=0,
            grid=grid,
            in_specs=[
                pl.BlockSpec((Cin + 1, tile_n), lambda j: (0, j)),
                pl.BlockSpec((K * Cout, Cin + 1), lambda j: (0, 0)),
            ],
            out_specs=pl.BlockSpec((Cout, tile_n), lambda j: (0, j)),
        ),
        compiler_params=pltpu.CompilerParams(
            dimension_semantics=("parallel",)),
    )(x_aug, w_aug)                                                  # (Cout, B*P)

    # Back to NCHW; tiny output transpose (B*Cout*4096 f32), negligible.
    return jnp.transpose(out.reshape(Cout, B, CROP, CROP), (1, 0, 2, 3))


def ensemble_forward_ref(x_nchw, weights, biases):
    """Pure-JAX reference mirroring the PyTorch forward semantics."""
    outs = []
    for k in range(weights.shape[0]):
        y = jnp.einsum('bchw,cd->bdhw', x_nchw, weights[k],
                       precision=jax.lax.Precision.HIGHEST)          # 1x1-conv stand-in
        y = y + biases[k][None, :, None, None]
        y = y[:, :, CROP_LO:CROP_HI, CROP_LO:CROP_HI]                # CenterCrop (last layer)
        outs.append(y)
    return jnp.mean(jnp.stack(outs, axis=1), axis=1)                 # stack + mean(dim=1)


if __name__ == "__main__":
    # Spatial must be 128x128 because the crop indices 32:96 are hard-coded.
    B, Cin, Cout, H, W, K = 2, 4, 2, 128, 128, 3

    key = jax.random.PRNGKey(0)
    kx, kw, kb = jax.random.split(key, 3)
    x = jax.random.normal(kx, (B, Cin, H, W), dtype=jnp.float32)
    weights = jax.random.normal(kw, (K, Cin, Cout), dtype=jnp.float32) * 0.1
    biases = jax.random.normal(kb, (K, Cout), dtype=jnp.float32) * 0.01

    ref = jax.block_until_ready(ensemble_forward_ref(x, weights, biases))

    # 1) Default path: bf16 HBM transport, f32 accumulation (loose tolerance).
    out_bf16 = jax.block_until_ready(ensemble_forward(x, weights, biases))
    assert out_bf16.shape == (B, Cout, CROP, CROP), out_bf16.shape
    assert jnp.allclose(out_bf16, ref, atol=5e-2, rtol=5e-2), "bf16-transport mismatch"

    # 2) f32 transport path (tight tolerance).
    out_f32 = jax.block_until_ready(
        ensemble_forward(x, weights, biases, transport_dtype=jnp.float32))
    assert jnp.allclose(out_f32, ref, atol=2e-3, rtol=2e-3), "f32-transport mismatch"

    # 3) Folded-ensemble fast path (exact only for the linear stand-in).
    out_fold = jax.block_until_ready(
        ensemble_forward(x, weights, biases,
                         transport_dtype=jnp.float32, fold_ensemble=True))
    assert jnp.allclose(out_fold, ref, atol=2e-3, rtol=2e-3), "folded-ensemble mismatch"

    print("KERNEL_OK")
</pallas_src>

<mosaic_0001>
module attributes {stable_mosaic.version = 11 : i64} {
  func.func @ensemble_kernel(%arg0: i32, %arg1: memref<5x4096xbf16, #tpu.memory_space<vmem>>, %arg2: memref<6x5xbf16, #tpu.memory_space<vmem>>, %arg3: memref<2x4096xf32, #tpu.memory_space<vmem>>) attributes {dimension_semantics = [#tpu.dimension_semantics<parallel>], iteration_bounds = array<i64: 2>, scalar_prefetch = 0 : i64, scratch_operands = 0 : i64, tpu.core_type = #tpu.core_type<tc>, window_params = [{transform_indices = @transform_0, window_bounds = array<i64: 5, 4096>}, {pipeline_mode = #tpu.pipeline_mode<synchronous>, transform_indices = @transform_1, window_bounds = array<i64: 6, 5>}, {transform_indices = @transform_2, window_bounds = array<i64: 2, 4096>}]} {
    %c0 = arith.constant 0 : index
    %c0_0 = arith.constant 0 : index
    %0 = vector.load %arg2[%c0, %c0_0] : memref<6x5xbf16, #tpu.memory_space<vmem>>, vector<6x5xbf16>
    %c0_1 = arith.constant 0 : index
    %c0_2 = arith.constant 0 : index
    %1 = vector.load %arg1[%c0_1, %c0_2] : memref<5x4096xbf16, #tpu.memory_space<vmem>>, vector<5x4096xbf16>
    %cst = arith.constant dense<0.000000e+00> : vector<6x4096xf32>
    %2 = tpu.matmul %0, %1, %cst {dimension_numbers = #tpu.dot_dimension_numbers<[1], [0], [0], [1], [0, 0, 1, 1], [], []>} : vector<6x5xbf16>, vector<5x4096xbf16>, vector<6x4096xf32> -> vector<6x4096xf32>
    %3 = vector.extract_strided_slice %2 {offsets = [0, 0], sizes = [2, 4096], strides = [1, 1]} : vector<6x4096xf32> to vector<2x4096xf32>
    %4 = vector.extract_strided_slice %2 {offsets = [2, 0], sizes = [2, 4096], strides = [1, 1]} : vector<6x4096xf32> to vector<2x4096xf32>
    %5 = arith.addf %3, %4 : vector<2x4096xf32>
    %6 = vector.extract_strided_slice %2 {offsets = [4, 0], sizes = [2, 4096], strides = [1, 1]} : vector<6x4096xf32> to vector<2x4096xf32>
    %7 = arith.addf %5, %6 : vector<2x4096xf32>
    %cst_3 = arith.constant 0.333333343 : f32
    %8 = vector.broadcast %cst_3 : f32 to vector<2x4096xf32>
    %9 = arith.mulf %7, %8 : vector<2x4096xf32>
    %c0_4 = arith.constant 0 : index
    %c0_5 = arith.constant 0 : index
    %10 = vector.load %arg3[%c0_4, %c0_5] : memref<2x4096xf32, #tpu.memory_space<vmem>>, vector<2x4096xf32>
    tpu.vector_store %arg3[%c0_4, %c0_5], %9 {strides = array<i32>} : memref<2x4096xf32, #tpu.memory_space<vmem>>, vector<2x4096xf32>,
    return
  }
  func.func @transform_0(%arg0: i32) -> (i32, i32) {
    %c0_i32 = arith.constant 0 : i32
    %c0_i32_0 = arith.constant 0 : i32
    return %c0_i32, %arg0 : i32, i32
  }
  func.func @transform_1(%arg0: i32) -> (i32, i32) {
    %c0_i32 = arith.constant 0 : i32
    %c0_i32_0 = arith.constant 0 : i32
    %c0_i32_1 = arith.constant 0 : i32
    return %c0_i32, %c0_i32_0 : i32, i32
  }
  func.func @transform_2(%arg0: i32) -> (i32, i32) {
    %c0_i32 = arith.constant 0 : i32
    %c0_i32_0 = arith.constant 0 : i32
    return %c0_i32, %arg0 : i32, i32
  }
}

</mosaic_0001>

<llo_original>
// kernel: tpu_custom_call.1
$region0: #{tpu_custom_call.1}
  #allocation0 [shape = 'u32[]', space=smem, size = 0x4, offset = 0x4, fixed_abs, tag = 'smem constant byte address 0x4 - core index']
  #allocation1 [shape = 'u32[72,128]{1,0:T(1,128)}', space=vmem, size = 0x9000, scoped, tag = 'internal scratch']
  %s0 = inlined_call_operand.hbm [shape: bf16[5,8192], index: 0, kind: input, shape index: {}]
  %s1 = inlined_call_operand.hbm [shape: bf16[6,5], index: 1, kind: input, shape index: {}]
  %s2 = inlined_call_operand.hbm [shape: f32[2,8192], index: 2, kind: output, shape index: {}]
  %s3 = sld [smem:[#allocation0]]
  $region49: #{tpu_custom_call.1} parent=0
    _
  %s5 = ssub.s32 1, %s3
  %s6 = scalar_select 0, %s5, %s3
  $region1: #{tpu_custom_call.1} parent=0
    #allocation2 [shape = 'u8[131072]{0}', space=vmem, size = 0x20000, scoped, tag = 'input window, operand 0']
    #allocation3 [shape = 's32[2]{0}', space=sflag, size = 0x8, scoped, tag = 'scoped memory for tpu_custom_call.1']
    #allocation4 [shape = 's32[2]{0}', space=sflag, size = 0x8, scoped, tag = 'scoped memory for tpu_custom_call.1']
    #allocation5 [shape = 'u8[2048]{0}', space=vmem, size = 0x800, scoped, tag = 'input window, operand 1, single buffered']
    #allocation6 [shape = 's32[1]{0}', space=sflag, size = 0x4, scoped, tag = 'scoped memory for tpu_custom_call.1']
    #allocation7 [shape = 'u8[65536]{0}', space=vmem, size = 0x10000, scoped, tag = 'output window, operand 0']
    %7 = vsyncpa [#allocation3], 0
    %s8 = scalar_lea.sflag [#allocation3], 1
    %9 = vsyncpa %s8, 0
    %10 = vsyncpa [#allocation6], 0
    %11 = vsyncpa [#allocation4], 0
    %s12 = scalar_lea.sflag [#allocation4], 1
    %13 = vsyncpa %s12, 0
    loop: start=0, step=1, limit=4
    $region2: #{tpu_custom_call.1} parent=1 // loop_pre_header
      _
    $region3: #{tpu_custom_call.1} parent=1 // loop_header
      %s15 = sphi 0, %s19
      %p16 = scmp.ge.s32.totalorder %s15, 4
      %s25 = sphi 0, %s27
      %s28 = sphi 0, %s25
      %s29 = sphi 0, %s28
      %s45 = sphi 0, %s29
      %s49 = sphi 0, %s49
      %s51 = sphi 0, %s49
      %s52 = sphi 0, %s51
      %s66 = sphi 0, %s52
      %s72 = sphi 0, %s74
      %s75 = sphi 0, %s72
      %s76 = sphi 0, %s75
      %s92 = sphi 0, %s76
    $region4: #{tpu_custom_call.1} parent=1 // loop_header_branch
      %18 = sbr.rel (%p16) target = $region8
    $region5: #{tpu_custom_call.1} parent=1 // loop_body
      %s20 = ssub.s32 %s15, 1
      %s21 = ssub.s32 %s15, 2
      %s22 = sadd.s32 %s15, 1
      %s23 = ssub.s32 %s15, %s22
      %p24 = scmp.eq.s32.totalorder %s23, 0
      %s26 = sadd.s32 %s25, 1
      %s27 = scalar_select %p24, %s25, %s26
      %p30 = pneg %p24
      %p31 = scmp.eq.s32.totalorder %s15, 1
      %p32 = por %p30, %p31
      %p33 = scmp.ne.s32.totalorder %s25, %s28
      %p34 = scmp.eq.s32.totalorder %s15, 0
      %p35 = por %p33, %p34
      %p36 = scmp.ne.s32.totalorder %s25, %s28
      %p37 = scmp.eq.s32.totalorder %s20, 1
      %p38 = por %p36, %p37
      %p39 = scmp.ne.s32.totalorder %s28, %s29
      %p40 = scmp.eq.s32.totalorder %s20, 0
      %p41 = por %p39, %p40
      %p42 = scmp.ne.s32.totalorder %s28, %s29
      %p43 = scmp.eq.s32.totalorder %s21, 1
      %p44 = por %p42, %p43
      %p46 = scmp.ne.s32.totalorder %s29, %s45
      %p47 = scmp.eq.s32.totalorder %s21, 0
      %p48 = por %p46, %p47
      %s50 = sadd.s32 %s49, 1
      %p53 = scmp.eq.s32.totalorder %s15, 1
      %p54 = scmp.ne.s32.totalorder %s49, %s51
      %p55 = scmp.eq.s32.totalorder %s15, 0
      %p56 = por %p54, %p55
      %p57 = scmp.ne.s32.totalorder %s49, %s51
      %p58 = scmp.eq.s32.totalorder %s20, 1
      %p59 = por %p57, %p58
      %p60 = scmp.ne.s32.totalorder %s51, %s52
      %p61 = scmp.eq.s32.totalorder %s20, 0
      %p62 = por %p60, %p61
      %p63 = scmp.ne.s32.totalorder %s51, %s52
      %p64 = scmp.eq.s32.totalorder %s21, 1
      %p65 = por %p63, %p64
      %p67 = scmp.ne.s32.totalorder %s52, %s66
      %p68 = scmp.eq.s32.totalorder %s21, 0
      %p69 = por %p67, %p68
      %s70 = ssub.s32 %s15, %s22
      %p71 = scmp.eq.s32.totalorder %s70, 0
      %s73 = sadd.s32 %s72, 1
      %s74 = scalar_select %p71, %s72, %s73
      %p77 = pneg %p71
      %p78 = scmp.eq.s32.totalorder %s15, 1
      %p79 = por %p77, %p78
      %p80 = scmp.ne.s32.totalorder %s72, %s75
      %p81 = scmp.eq.s32.totalorder %s15, 0
      %p82 = por %p80, %p81
      %p83 = scmp.ne.s32.totalorder %s72, %s75
      %p84 = scmp.eq.s32.totalorder %s20, 1
      %p85 = por %p83, %p84
      %p86 = scmp.ne.s32.totalorder %s75, %s76
      %p87 = scmp.eq.s32.totalorder %s20, 0
      %p88 = por %p86, %p87
      %p89 = scmp.ne.s32.totalorder %s75, %s76
      %p90 = scmp.eq.s32.totalorder %s21, 1
      %p91 = por %p89, %p90
      %p93 = scmp.ne.s32.totalorder %s76, %s92
      %p94 = scmp.eq.s32.totalorder %s21, 0
      %p95 = por %p93, %p94
      %p96 = scmp.le.s32.totalorder 1, %s15
      %p97 = scmp.lt.s32.totalorder %s15, 3
      %p98 = pnand %p96, %p97
      %p99 = pneg %p98
      // Predicated region
      $region9: #{tpu_custom_call.1} parent=5 // pred_check
        _
      $region10: #{tpu_custom_call.1} parent=5 // pred_check_branch
        %101 = sbr.rel (%p98) target = $region12
      $region11: #{tpu_custom_call.1} parent=5 // pred_region
        %s102 = ssub.s32 %s15, 1
        // Predicated region
        $region13: #{tpu_custom_call.1} parent=11 // pred_check
          %p103 = pneg %p62
        $region14: #{tpu_custom_call.1} parent=11 // pred_check_branch
          %105 = sbr.rel (%p103) target = $region16
        $region15: #{tpu_custom_call.1} parent=11 // pred_region
          %107 = vsyncadd [#allocation6], 0
          %s109 = sshll.u32 %s1, 4
          %s110 = int_to_ptr.hbm [resolvable:$true] %s109
          %s111 = sshll.u32 [#allocation5], 4
          %s112 = int_to_ptr.vmem [resolvable:$true] %s111
          %114 = dma.hbm_to_vmem [thread:$0]  %s110, 64, %s112, [#allocation6]
        $region16: #{tpu_custom_call.1} parent=11 // pred_fallthru
          _
      $region12: #{tpu_custom_call.1} parent=5 // pred_fallthru
        _
      %p115 = scmp.lt.s32.totalorder %s15, 2
      // Predicated region
      $region17: #{tpu_custom_call.1} parent=5 // pred_check
        %p116 = pneg %p115
      $region18: #{tpu_custom_call.1} parent=5 // pred_check_branch
        %118 = sbr.rel (%p116) target = $region20
      $region19: #{tpu_custom_call.1} parent=5 // pred_region
        // Predicated region
        $region21: #{tpu_custom_call.1} parent=19 // pred_check
          %p119 = pneg %p35
        $region22: #{tpu_custom_call.1} parent=19 // pred_check_branch
          %121 = sbr.rel (%p119) target = $region24
        $region23: #{tpu_custom_call.1} parent=19 // pred_region
          %s122 = sand.u32 %s25, 1
          %s123 = scalar_lea.sflag [#allocation3], %s122
          %s124 = sand.u32 %s25, 1
          %s125 = smul.addr %s124, 128
          %s126 = scalar_lea.vmem [#allocation2], %s125
          %s127 = smul.u32 32, %s15
          %129 = vsyncadd %s123, 0
          %s130 = smul.addr %s127, 4
          %s131 = scalar_lea.hbm %s0, %s130
          %s133 = sshll.u32 %s131, 4
          %s134 = int_to_ptr.hbm [resolvable:$true] %s133
          %s135 = sshll.u32 %s126, 4
          %s136 = int_to_ptr.vmem [resolvable:$true] %s135
          %138 = dma.hbm_to_vmem [thread:$0]  %s134, 2048, %s136, %s123
        $region24: #{tpu_custom_call.1} parent=19 // pred_fallthru
          _
      $region20: #{tpu_custom_call.1} parent=5 // pred_fallthru
        _
      %p139 = scmp.le.s32.totalorder 1, %s15
      %p140 = scmp.lt.s32.totalorder %s15, 3
      %p141 = pnand %p139, %p140
      %p142 = pneg %p141
      // Predicated region
      $region25: #{tpu_custom_call.1} parent=5 // pred_check
        _
      $region26: #{tpu_custom_call.1} parent=5 // pred_check_branch
        %144 = sbr.rel (%p141) target = $region28
      $region27: #{tpu_custom_call.1} parent=5 // pred_region
        %s145 = ssub.s32 %s15, 1
        %s146 = sand.u32 %s28, 1
        %s147 = scalar_lea.sflag [#allocation3], %s146
        %s148 = sand.u32 %s28, 1
        %s149 = smul.addr %s148, 128
        %s150 = scalar_lea.vmem [#allocation2], %s149
        // Predicated region
        $region29: #{tpu_custom_call.1} parent=27 // pred_check
          %p151 = pneg %p41
        $region30: #{tpu_custom_call.1} parent=27 // pred_check_branch
          %153 = sbr.rel (%p151) target = $region32
        $region31: #{tpu_custom_call.1} parent=27 // pred_region
          %155 = dma.done %s147, 2048
        $region32: #{tpu_custom_call.1} parent=27 // pred_fallthru
          _
        // Predicated region
        $region33: #{tpu_custom_call.1} parent=27 // pred_check
          %p156 = pneg %p62
        $region34: #{tpu_custom_call.1} parent=27 // pred_check_branch
          %158 = sbr.rel (%p156) target = $region36
        $region35: #{tpu_custom_call.1} parent=27 // pred_region
          %160 = dma.done [#allocation6], 64
        $region36: #{tpu_custom_call.1} parent=27 // pred_fallthru
          _
        %s161 = sand.u32 %s28, 1
        %s162 = scalar_lea.sflag [#allocation3], %s161
        %s163 = sand.u32 %s28, 1
        %s164 = smul.addr %s163, 128
        %s165 = scalar_lea.vmem [#allocation2], %s164
        %p166 = pneg %p41
        %p167 = pneg %p38
        %p168 = pneg %p62
        %p169 = pneg %p59
        %p170 = pneg %p88
        %p171 = pneg %p85
        %s172 = sand.u32 %s75, 1
        %s173 = scalar_lea.sflag [#allocation4], %s172
        %s174 = sand.u32 %s75, 1
        %s175 = smul.addr %s174, 64
        %s176 = scalar_lea.vmem [#allocation7], %s175
        %s177 = smul.u32 32, %s20
        %s178 = smul.u32 32, %s20
        %v180 = vld [vmem:[#allocation5] sm:$0x7]
        %v181 = vld [vmem:[%s150] sm:$0x77]
        %v182 = vld [vmem:[%s150 + $0x8] sm:$0x77]
        %v183 = vld [vmem:[%s150 + $0x10] sm:$0x77]
        %v184 = vld [vmem:[%s150 + $0x18] sm:$0x77]
        %v185 = vld [vmem:[%s150 + $0x20] sm:$0x77]
        %v186 = vld [vmem:[%s150 + $0x28] sm:$0x77]
        %v187 = vld [vmem:[%s150 + $0x30] sm:$0x77]
        %v188 = vld [vmem:[%s150 + $0x38] sm:$0x77]
        %v189 = vld [vmem:[%s150 + $0x40] sm:$0x77]
        %v190 = vld [vmem:[%s150 + $0x48] sm:$0x77]
        %v191 = vld [vmem:[%s150 + $0x50] sm:$0x77]
        %v192 = vld [vmem:[%s150 + $0x58] sm:$0x77]
        %v193 = vld [vmem:[%s150 + $0x60] sm:$0x77]
        %v194 = vld [vmem:[%s150 + $0x68] sm:$0x77]
        %v195 = vld [vmem:[%s150 + $0x70] sm:$0x77]
        %v196 = vld [vmem:[%s150 + $0x78] sm:$0x77]
        %v213 = vunpack.c.l.b16 %v181
        %v214 = vunpack.c.h.b16 %v181
        %v215 = vunpack.c.l.b16 %v182
        %v216 = vunpack.c.h.b16 %v182
        %v217 = vunpack.c.l.b16 %v183
        %v218 = vunpack.c.h.b16 %v183
        %v219 = vunpack.c.l.b16 %v184
        %v220 = vunpack.c.h.b16 %v184
        %v221 = vunpack.c.l.b16 %v185
        %v222 = vunpack.c.h.b16 %v185
        %v223 = vunpack.c.l.b16 %v186
        %v224 = vunpack.c.h.b16 %v186
        %v225 = vunpack.c.l.b16 %v187
        %v226 = vunpack.c.h.b16 %v187
        %v227 = vunpack.c.l.b16 %v188
        %v228 = vunpack.c.h.b16 %v188
        %v229 = vunpack.c.l.b16 %v189
        %v230 = vunpack.c.h.b16 %v189
        %v231 = vunpack.c.l.b16 %v190
        %v232 = vunpack.c.h.b16 %v190
        %v233 = vunpack.c.l.b16 %v191
        %v234 = vunpack.c.h.b16 %v191
        %v235 = vunpack.c.l.b16 %v192
        %v236 = vunpack.c.h.b16 %v192
        %v237 = vunpack.c.l.b16 %v193
        %v238 = vunpack.c.h.b16 %v193
        %v239 = vunpack.c.l.b16 %v194
        %v240 = vunpack.c.h.b16 %v194
        %v241 = vunpack.c.l.b16 %v195
        %v242 = vunpack.c.h.b16 %v195
        %v243 = vunpack.c.l.b16 %v196
        %v244 = vunpack.c.h.b16 %v196
        %v245 = vpack.c.b16 %v213, %v213
        %v246 = vpack.c.b16 %v214, %v214
        %v247 = vpack.c.b16 %v215, %v215
        %v248 = vpack.c.b16 %v216, %v216
        %v249 = vpack.c.b16 %v217, %v217
        %v250 = vpack.c.b16 %v218, %v218
        %v251 = vpack.c.b16 %v219, %v219
        %v252 = vpack.c.b16 %v220, %v220
        %v253 = vpack.c.b16 %v221, %v221
        %v254 = vpack.c.b16 %v222, %v222
        %v255 = vpack.c.b16 %v223, %v223
        %v256 = vpack.c.b16 %v224, %v224
        %v257 = vpack.c.b16 %v225, %v225
        %v258 = vpack.c.b16 %v226, %v226
        %v259 = vpack.c.b16 %v227, %v227
        %v260 = vpack.c.b16 %v228, %v228
        %v261 = vpack.c.b16 %v229, %v229
        %v262 = vpack.c.b16 %v230, %v230
        %v263 = vpack.c.b16 %v231, %v231
        %v264 = vpack.c.b16 %v232, %v232
        %v265 = vpack.c.b16 %v233, %v233
        %v266 = vpack.c.b16 %v234, %v234
        %v267 = vpack.c.b16 %v235, %v235
        %v268 = vpack.c.b16 %v236, %v236
        %v269 = vpack.c.b16 %v237, %v237
        %v270 = vpack.c.b16 %v238, %v238
        %v271 = vpack.c.b16 %v239, %v239
        %v272 = vpack.c.b16 %v240, %v240
        %v273 = vpack.c.b16 %v241, %v241
        %v274 = vpack.c.b16 %v242, %v242
        %v275 = vpack.c.b16 %v243, %v243
        %v276 = vpack.c.b16 %v244, %v244
        %vm277 = vcmask 39936
        %v279 = vsel %vm277, %v180, 0
        %vm281 = vcmask 1041408
        %vm282 = vcmask 1042432
        %v283 = vsel %vm281, 4294967295, 65535
        %v284 = vsel %vm282, %v283, 0
        %v286 = vand.u32 %v245, %v284
        %v289 = vand.u32 %v246, %v284
        %v292 = vand.u32 %v247, %v284
        %v295 = vand.u32 %v248, %v284
        %v298 = vand.u32 %v249, %v284
        %v301 = vand.u32 %v250, %v284
        %v304 = vand.u32 %v251, %v284
        %v307 = vand.u32 %v252, %v284
        %v310 = vand.u32 %v253, %v284
        %v313 = vand.u32 %v254, %v284
        %v316 = vand.u32 %v255, %v284
        %v319 = vand.u32 %v256, %v284
        %v322 = vand.u32 %v257, %v284
        %v325 = vand.u32 %v258, %v284
        %v328 = vand.u32 %v259, %v284
        %v331 = vand.u32 %v260, %v284
        %v334 = vand.u32 %v261, %v284
        %v337 = vand.u32 %v262, %v284
        %v340 = vand.u32 %v263, %v284
        %v343 = vand.u32 %v264, %v284
        %v346 = vand.u32 %v265, %v284
        %v349 = vand.u32 %v266, %v284
        %v352 = vand.u32 %v267, %v284
        %v355 = vand.u32 %v268, %v284
        %v358 = vand.u32 %v269, %v284
        %v361 = vand.u32 %v270, %v284
        %v364 = vand.u32 %v271, %v284
        %v367 = vand.u32 %v272, %v284
        %v370 = vand.u32 %v273, %v284
        %v373 = vand.u32 %v274, %v284
        %v376 = vand.u32 %v275, %v284
        %v379 = vand.u32 %v276, %v284
        %381 = vmatpush.bf16.msra.mxu0 0
        %382 = vmatpush.bf16.msra.mxu0 0
        %383 = vmatpush.bf16.msra.mxu0 0
        %384 = vmatpush.bf16.msra.mxu0 0
        %385 = vmatpush.bf16.msra.mxu0 0
        %386 = vmatpush.bf16.msra.mxu0 0
        %387 = vmatpush.bf16.msra.mxu0 0
        %388 = vmatpush.bf16.msra.mxu0 %v286
        %389 = vmatmul.bf16.gmra.mxu0 %v279
        %v390 = vpop.f32.mrf.mxu0
        %v391 = vadd.f32 0.0, %v390
        %v392 = vpop.f32.mrf.mxu0
        %393 = vdwg.mxu0
        %394 = vmatpush.bf16.msra.mxu0 0
        %395 = vmatpush.bf16.msra.mxu0 0
        %396 = vmatpush.bf16.msra.mxu0 0
        %397 = vmatpush.bf16.msra.mxu0 0
        %398 = vmatpush.bf16.msra.mxu0 0
        %399 = vmatpush.bf16.msra.mxu0 0
        %400 = vmatpush.bf16.msra.mxu0 0
        %401 = vmatpush.bf16.msra.mxu0 %v289
        %402 = vmatmul.bf16.gmra.mxu0 %v279
        %v403 = vpop.f32.mrf.mxu0
        %v404 = vadd.f32 0.0, %v403
        %v405 = vpop.f32.mrf.mxu0
        %406 = vdwg.mxu0
        %407 = vmatpush.bf16.msra.mxu0 0
        %408 = vmatpush.bf16.msra.mxu0 0
        %409 = vmatpush.bf16.msra.mxu0 0
        %410 = vmatpush.bf16.msra.mxu0 0
        %411 = vmatpush.bf16.msra.mxu0 0
        %412 = vmatpush.bf16.msra.mxu0 0
        %413 = vmatpush.bf16.msra.mxu0 0
        %414 = vmatpush.bf16.msra.mxu0 %v292
        %415 = vmatmul.bf16.gmra.mxu0 %v279
        %v416 = vpop.f32.mrf.mxu0
        %v417 = vadd.f32 0.0, %v416
        %v418 = vpop.f32.mrf.mxu0
        %419 = vdwg.mxu0
        %420 = vmatpush.bf16.msra.mxu0 0
        %421 = vmatpush.bf16.msra.mxu0 0
        %422 = vmatpush.bf16.msra.mxu0 0
        %423 = vmatpush.bf16.msra.mxu0 0
        %424 = vmatpush.bf16.msra.mxu0 0
        %425 = vmatpush.bf16.msra.mxu0 0
        %426 = vmatpush.bf16.msra.mxu0 0
        %427 = vmatpush.bf16.msra.mxu0 %v295
        %428 = vmatmul.bf16.gmra.mxu0 %v279
        %v429 = vpop.f32.mrf.mxu0
        %v430 = vadd.f32 0.0, %v429
        %v431 = vpop.f32.mrf.mxu0
        %432 = vdwg.mxu0
        %433 = vmatpush.bf16.msra.mxu0 0
        %434 = vmatpush.bf16.msra.mxu0 0
        %435 = vmatpush.bf16.msra.mxu0 0
        %436 = vmatpush.bf16.msra.mxu0 0
        %437 = vmatpush.bf16.msra.mxu0 0
        %438 = vmatpush.bf16.msra.mxu0 0
        %439 = vmatpush.bf16.msra.mxu0 0
        %440 = vmatpush.bf16.msra.mxu0 %v298
        %441 = vmatmul.bf16.gmra.mxu0 %v279
        %v442 = vpop.f32.mrf.mxu0
        %v443 = vadd.f32 0.0, %v442
        %v444 = vpop.f32.mrf.mxu0
        %445 = vdwg.mxu0
        %446 = vmatpush.bf16.msra.mxu0 0
        %447 = vmatpush.bf16.msra.mxu0 0
        %448 = vmatpush.bf16.msra.mxu0 0
        %449 = vmatpush.bf16.msra.mxu0 0
        %450 = vmatpush.bf16.msra.mxu0 0
        %451 = vmatpush.bf16.msra.mxu0 0
        %452 = vmatpush.bf16.msra.mxu0 0
        %453 = vmatpush.bf16.msra.mxu0 %v301
        %454 = vmatmul.bf16.gmra.mxu0 %v279
        %v455 = vpop.f32.mrf.mxu0
        %v456 = vadd.f32 0.0, %v455
        %v457 = vpop.f32.mrf.mxu0
        %458 = vdwg.mxu0
        %459 = vmatpush.bf16.msra.mxu0 0
        %460 = vmatpush.bf16.msra.mxu0 0
        %461 = vmatpush.bf16.msra.mxu0 0
        %462 = vmatpush.bf16.msra.mxu0 0
        %463 = vmatpush.bf16.msra.mxu0 0
        %464 = vmatpush.bf16.msra.mxu0 0
        %465 = vmatpush.bf16.msra.mxu0 0
        %466 = vmatpush.bf16.msra.mxu0 %v304
        %467 = vmatmul.bf16.gmra.mxu0 %v279
        %v468 = vpop.f32.mrf.mxu0
        %v469 = vadd.f32 0.0, %v468
        %v470 = vpop.f32.mrf.mxu0
        %471 = vdwg.mxu0
        %472 = vmatpush.bf16.msra.mxu0 0
        %473 = vmatpush.bf16.msra.mxu0 0
        %474 = vmatpush.bf16.msra.mxu0 0
        %475 = vmatpush.bf16.msra.mxu0 0
        %476 = vmatpush.bf16.msra.mxu0 0
        %477 = vmatpush.bf16.msra.mxu0 0
        %478 = vmatpush.bf16.msra.mxu0 0
        %479 = vmatpush.bf16.msra.mxu0 %v307
        %480 = vmatmul.bf16.gmra.mxu0 %v279
        %v481 = vpop.f32.mrf.mxu0
        %v482 = vadd.f32 0.0, %v481
        %v483 = vpop.f32.mrf.mxu0
        %484 = vdwg.mxu0
        %485 = vmatpush.bf16.msra.mxu0 0
        %486 = vmatpush.bf16.msra.mxu0 0
        %487 = vmatpush.bf16.msra.mxu0 0
        %488 = vmatpush.bf16.msra.mxu0 0
        %489 = vmatpush.bf16.msra.mxu0 0
        %490 = vmatpush.bf16.msra.mxu0 0
        %491 = vmatpush.bf16.msra.mxu0 0
        %492 = vmatpush.bf16.msra.mxu0 %v310
        %493 = vmatmul.bf16.gmra.mxu0 %v279
        %v494 = vpop.f32.mrf.mxu0
        %v495 = vadd.f32 0.0, %v494
        %v496 = vpop.f32.mrf.mxu0
        %497 = vdwg.mxu0
        %498 = vmatpush.bf16.msra.mxu0 0
        %499 = vmatpush.bf16.msra.mxu0 0
        %500 = vmatpush.bf16.msra.mxu0 0
        %501 = vmatpush.bf16.msra.mxu0 0
        %502 = vmatpush.bf16.msra.mxu0 0
        %503 = vmatpush.bf16.msra.mxu0 0
        %504 = vmatpush.bf16.msra.mxu0 0
        %505 = vmatpush.bf16.msra.mxu0 %v313
        %506 = vmatmul.bf16.gmra.mxu0 %v279
        %v507 = vpop.f32.mrf.mxu0
        %v508 = vadd.f32 0.0, %v507
        %v509 = vpop.f32.mrf.mxu0
        %510 = vdwg.mxu0
        %511 = vmatpush.bf16.msra.mxu0 0
        %512 = vmatpush.bf16.msra.mxu0 0
        %513 = vmatpush.bf16.msra.mxu0 0
        %514 = vmatpush.bf16.msra.mxu0 0
        %515 = vmatpush.bf16.msra.mxu0 0
        %516 = vmatpush.bf16.msra.mxu0 0
        %517 = vmatpush.bf16.msra.mxu0 0
        %518 = vmatpush.bf16.msra.mxu0 %v316
        %519 = vmatmul.bf16.gmra.mxu0 %v279
        %v520 = vpop.f32.mrf.mxu0
        %v521 = vadd.f32 0.0, %v520
        %v522 = vpop.f32.mrf.mxu0
        %523 = vdwg.mxu0
        %524 = vmatpush.bf16.msra.mxu0 0
        %525 = vmatpush.bf16.msra.mxu0 0
        %526 = vmatpush.bf16.msra.mxu0 0
        %527 = vmatpush.bf16.msra.mxu0 0
        %528 = vmatpush.bf16.msra.mxu0 0
        %529 = vmatpush.bf16.msra.mxu0 0
        %530 = vmatpush.bf16.msra.mxu0 0
        %531 = vmatpush.bf16.msra.mxu0 %v319
        %532 = vmatmul.bf16.gmra.mxu0 %v279
        %v533 = vpop.f32.mrf.mxu0
        %v534 = vadd.f32 0.0, %v533
        %v535 = vpop.f32.mrf.mxu0
        %536 = vdwg.mxu0
        %537 = vmatpush.bf16.msra.mxu0 0
        %538 = vmatpush.bf16.msra.mxu0 0
        %539 = vmatpush.bf16.msra.mxu0 0
        %540 = vmatpush.bf16.msra.mxu0 0
        %541 = vmatpush.bf16.msra.mxu0 0
        %542 = vmatpush.bf16.msra.mxu0 0
        %543 = vmatpush.bf16.msra.mxu0 0
        %544 = vmatpush.bf16.msra.mxu0 %v322
        %545 = vmatmul.bf16.gmra.mxu0 %v279
        %v546 = vpop.f32.mrf.mxu0
        %v547 = vadd.f32 0.0, %v546
        %v548 = vpop.f32.mrf.mxu0
        %549 = vdwg.mxu0
        %550 = vmatpush.bf16.msra.mxu0 0
        %551 = vmatpush.bf16.msra.mxu0 0
        %552 = vmatpush.bf16.msra.mxu0 0
        %553 = vmatpush.bf16.msra.mxu0 0
        %554 = vmatpush.bf16.msra.mxu0 0
        %555 = vmatpush.bf16.msra.mxu0 0
        %556 = vmatpush.bf16.msra.mxu0 0
        %557 = vmatpush.bf16.msra.mxu0 %v325
        %558 = vmatmul.bf16.gmra.mxu0 %v279
        %v559 = vpop.f32.mrf.mxu0
        %v560 = vadd.f32 0.0, %v559
        %v561 = vpop.f32.mrf.mxu0
        %562 = vdwg.mxu0
        %563 = vmatpush.bf16.msra.mxu0 0
        %564 = vmatpush.bf16.msra.mxu0 0
        %565 = vmatpush.bf16.msra.mxu0 0
        %566 = vmatpush.bf16.msra.mxu0 0
        %567 = vmatpush.bf16.msra.mxu0 0
        %568 = vmatpush.bf16.msra.mxu0 0
        %569 = vmatpush.bf16.msra.mxu0 0
        %570 = vmatpush.bf16.msra.mxu0 %v328
        %571 = vmatmul.bf16.gmra.mxu0 %v279
        %v572 = vpop.f32.mrf.mxu0
        %v573 = vadd.f32 0.0, %v572
        %v574 = vpop.f32.mrf.mxu0
        %575 = vdwg.mxu0
        %576 = vmatpush.bf16.msra.mxu0 0
        %577 = vmatpush.bf16.msra.mxu0 0
        %578 = vmatpush.bf16.msra.mxu0 0
        %579 = vmatpush.bf16.msra.mxu0 0
        %580 = vmatpush.bf16.msra.mxu0 0
        %581 = vmatpush.bf16.msra.mxu0 0
        %582 = vmatpush.bf16.msra.mxu0 0
        %583 = vmatpush.bf16.msra.mxu0 %v331
        %584 = vmatmul.bf16.gmra.mxu0 %v279
        %v585 = vpop.f32.mrf.mxu0
        %v586 = vadd.f32 0.0, %v585
        %v587 = vpop.f32.mrf.mxu0
        %588 = vdwg.mxu0
        %589 = vmatpush.bf16.msra.mxu0 0
        %590 = vmatpush.bf16.msra.mxu0 0
        %591 = vmatpush.bf16.msra.mxu0 0
        %592 = vmatpush.bf16.msra.mxu0 0
        %593 = vmatpush.bf16.msra.mxu0 0
        %594 = vmatpush.bf16.msra.mxu0 0
        %595 = vmatpush.bf16.msra.mxu0 0
        %596 = vmatpush.bf16.msra.mxu0 %v334
        %597 = vmatmul.bf16.gmra.mxu0 %v279
        %v598 = vpop.f32.mrf.mxu0
        %v599 = vadd.f32 0.0, %v598
        %v600 = vpop.f32.mrf.mxu0
        %601 = vdwg.mxu0
        %602 = vmatpush.bf16.msra.mxu0 0
        %603 = vmatpush.bf16.msra.mxu0 0
        %604 = vmatpush.bf16.msra.mxu0 0
        %605 = vmatpush.bf16.msra.mxu0 0
        %606 = vmatpush.bf16.msra.mxu0 0
        %607 = vmatpush.bf16.msra.mxu0 0
        %608 = vmatpush.bf16.msra.mxu0 0
        %609 = vmatpush.bf16.msra.mxu0 %v337
        %610 = vmatmul.bf16.gmra.mxu0 %v279
        %v611 = vpop.f32.mrf.mxu0
        %v612 = vadd.f32 0.0, %v611
        %v613 = vpop.f32.mrf.mxu0
        %614 = vdwg.mxu0
        %615 = vmatpush.bf16.msra.mxu0 0
        %616 = vmatpush.bf16.msra.mxu0 0
        %617 = vmatpush.bf16.msra.mxu0 0
        %618 = vmatpush.bf16.msra.mxu0 0
        %619 = vmatpush.bf16.msra.mxu0 0
        %620 = vmatpush.bf16.msra.mxu0 0
        %621 = vmatpush.bf16.msra.mxu0 0
        %622 = vmatpush.bf16.msra.mxu0 %v340
        %623 = vmatmul.bf16.gmra.mxu0 %v279
        %v624 = vpop.f32.mrf.mxu0
        %v625 = vadd.f32 0.0, %v624
        %v626 = vpop.f32.mrf.mxu0
        %627 = vdwg.mxu0
        %628 = vmatpush.bf16.msra.mxu0 0
        %629 = vmatpush.bf16.msra.mxu0 0
        %630 = vmatpush.bf16.msra.mxu0 0
        %631 = vmatpush.bf16.msra.mxu0 0
        %632 = vmatpush.bf16.msra.mxu0 0
        %633 = vmatpush.bf16.msra.mxu0 0
        %634 = vmatpush.bf16.msra.mxu0 0
        %635 = vmatpush.bf16.msra.mxu0 %v343
        %636 = vmatmul.bf16.gmra.mxu0 %v279
        %v637 = vpop.f32.mrf.mxu0
        %v638 = vadd.f32 0.0, %v637
        %v639 = vpop.f32.mrf.mxu0
        %640 = vdwg.mxu0
        %641 = vmatpush.bf16.msra.mxu0 0
        %642 = vmatpush.bf16.msra.mxu0 0
        %643 = vmatpush.bf16.msra.mxu0 0
        %644 = vmatpush.bf16.msra.mxu0 0
        %645 = vmatpush.bf16.msra.mxu0 0
        %646 = vmatpush.bf16.msra.mxu0 0
        %647 = vmatpush.bf16.msra.mxu0 0
        %648 = vmatpush.bf16.msra.mxu0 %v346
        %649 = vmatmul.bf16.gmra.mxu0 %v279
        %v650 = vpop.f32.mrf.mxu0
        %v651 = vadd.f32 0.0, %v650
        %v652 = vpop.f32.mrf.mxu0
        %653 = vdwg.mxu0
        %654 = vmatpush.bf16.msra.mxu0 0
        %655 = vmatpush.bf16.msra.mxu0 0
        %656 = vmatpush.bf16.msra.mxu0 0
        %657 = vmatpush.bf16.msra.mxu0 0
        %658 = vmatpush.bf16.msra.mxu0 0
        %659 = vmatpush.bf16.msra.mxu0 0
        %660 = vmatpush.bf16.msra.mxu0 0
        %661 = vmatpush.bf16.msra.mxu0 %v349
        %662 = vmatmul.bf16.gmra.mxu0 %v279
        %v663 = vpop.f32.mrf.mxu0
        %v664 = vadd.f32 0.0, %v663
        %v665 = vpop.f32.mrf.mxu0
        %666 = vdwg.mxu0
        %667 = vmatpush.bf16.msra.mxu0 0
        %668 = vmatpush.bf16.msra.mxu0 0
        %669 = vmatpush.bf16.msra.mxu0 0
        %670 = vmatpush.bf16.msra.mxu0 0
        %671 = vmatpush.bf16.msra.mxu0 0
        %672 = vmatpush.bf16.msra.mxu0 0
        %673 = vmatpush.bf16.msra.mxu0 0
        %674 = vmatpush.bf16.msra.mxu0 %v352
        %675 = vmatmul.bf16.gmra.mxu0 %v279
        %v676 = vpop.f32.mrf.mxu0
        %v677 = vadd.f32 0.0, %v676
        %v678 = vpop.f32.mrf.mxu0
        %679 = vdwg.mxu0
        %680 = vmatpush.bf16.msra.mxu0 0
        %681 = vmatpush.bf16.msra.mxu0 0
        %682 = vmatpush.bf16.msra.mxu0 0
        %683 = vmatpush.bf16.msra.mxu0 0
        %684 = vmatpush.bf16.msra.mxu0 0
        %685 = vmatpush.bf16.msra.mxu0 0
        %686 = vmatpush.bf16.msra.mxu0 0
        %687 = vmatpush.bf16.msra.mxu0 %v355
        %688 = vmatmul.bf16.gmra.mxu0 %v279
        %v689 = vpop.f32.mrf.mxu0
        %v690 = vadd.f32 0.0, %v689
        %v691 = vpop.f32.mrf.mxu0
        %692 = vdwg.mxu0
        %693 = vmatpush.bf16.msra.mxu0 0
        %694 = vmatpush.bf16.msra.mxu0 0
        %695 = vmatpush.bf16.msra.mxu0 0
        %696 = vmatpush.bf16.msra.mxu0 0
        %697 = vmatpush.bf16.msra.mxu0 0
        %698 = vmatpush.bf16.msra.mxu0 0
        %699 = vmatpush.bf16.msra.mxu0 0
        %700 = vmatpush.bf16.msra.mxu0 %v358
        %701 = vmatmul.bf16.gmra.mxu0 %v279
        %v702 = vpop.f32.mrf.mxu0
        %v703 = vadd.f32 0.0, %v702
        %v704 = vpop.f32.mrf.mxu0
        %705 = vdwg.mxu0
        %706 = vmatpush.bf16.msra.mxu0 0
        %707 = vmatpush.bf16.msra.mxu0 0
        %708 = vmatpush.bf16.msra.mxu0 0
        %709 = vmatpush.bf16.msra.mxu0 0
        %710 = vmatpush.bf16.msra.mxu0 0
        %711 = vmatpush.bf16.msra.mxu0 0
        %712 = vmatpush.bf16.msra.mxu0 0
        %713 = vmatpush.bf16.msra.mxu0 %v361
        %714 = vmatmul.bf16.gmra.mxu0 %v279
        %v715 = vpop.f32.mrf.mxu0
        %v716 = vadd.f32 0.0, %v715
        %v717 = vpop.f32.mrf.mxu0
        %718 = vdwg.mxu0
        %719 = vmatpush.bf16.msra.mxu0 0
        %720 = vmatpush.bf16.msra.mxu0 0
        %721 = vmatpush.bf16.msra.mxu0 0
        %722 = vmatpush.bf16.msra.mxu0 0
        %723 = vmatpush.bf16.msra.mxu0 0
        %724 = vmatpush.bf16.msra.mxu0 0
        %725 = vmatpush.bf16.msra.mxu0 0
        %726 = vmatpush.bf16.msra.mxu0 %v364
        %727 = vmatmul.bf16.gmra.mxu0 %v279
        %v728 = vpop.f32.mrf.mxu0
        %v729 = vadd.f32 0.0, %v728
        %v730 = vpop.f32.mrf.mxu0
        %731 = vdwg.mxu0
        %732 = vmatpush.bf16.msra.mxu0 0
        %733 = vmatpush.bf16.msra.mxu0 0
        %734 = vmatpush.bf16.msra.mxu0 0
        %735 = vmatpush.bf16.msra.mxu0 0
        %736 = vmatpush.bf16.msra.mxu0 0
        %737 = vmatpush.bf16.msra.mxu0 0
        %738 = vmatpush.bf16.msra.mxu0 0
        %739 = vmatpush.bf16.msra.mxu0 %v367
        %740 = vmatmul.bf16.gmra.mxu0 %v279
        %v741 = vpop.f32.mrf.mxu0
        %v742 = vadd.f32 0.0, %v741
        %v743 = vpop.f32.mrf.mxu0
        %744 = vdwg.mxu0
        %745 = vmatpush.bf16.msra.mxu0 0
        %746 = vmatpush.bf16.msra.mxu0 0
        %747 = vmatpush.bf16.msra.mxu0 0
        %748 = vmatpush.bf16.msra.mxu0 0
        %749 = vmatpush.bf16.msra.mxu0 0
        %750 = vmatpush.bf16.msra.mxu0 0
        %751 = vmatpush.bf16.msra.mxu0 0
        %752 = vmatpush.bf16.msra.mxu0 %v370
        %753 = vmatmul.bf16.gmra.mxu0 %v279
        %v754 = vpop.f32.mrf.mxu0
        %v755 = vadd.f32 0.0, %v754
        %v756 = vpop.f32.mrf.mxu0
        %757 = vdwg.mxu0
        %758 = vmatpush.bf16.msra.mxu0 0
        %759 = vmatpush.bf16.msra.mxu0 0
        %760 = vmatpush.bf16.msra.mxu0 0
        %761 = vmatpush.bf16.msra.mxu0 0
        %762 = vmatpush.bf16.msra.mxu0 0
        %763 = vmatpush.bf16.msra.mxu0 0
        %764 = vmatpush.bf16.msra.mxu0 0
        %765 = vmatpush.bf16.msra.mxu0 %v373
        %766 = vmatmul.bf16.gmra.mxu0 %v279
        %v767 = vpop.f32.mrf.mxu0
        %v768 = vadd.f32 0.0, %v767
        %v769 = vpop.f32.mrf.mxu0
        %770 = vdwg.mxu0
        %771 = vmatpush.bf16.msra.mxu0 0
        %772 = vmatpush.bf16.msra.mxu0 0
        %773 = vmatpush.bf16.msra.mxu0 0
        %774 = vmatpush.bf16.msra.mxu0 0
        %775 = vmatpush.bf16.msra.mxu0 0
        %776 = vmatpush.bf16.msra.mxu0 0
        %777 = vmatpush.bf16.msra.mxu0 0
        %778 = vmatpush.bf16.msra.mxu0 %v376
        %779 = vmatmul.bf16.gmra.mxu0 %v279
        %v780 = vpop.f32.mrf.mxu0
        %v781 = vadd.f32 0.0, %v780
        %v782 = vpop.f32.mrf.mxu0
        %783 = vdwg.mxu0
        %784 = vmatpush.bf16.msra.mxu0 0
        %785 = vmatpush.bf16.msra.mxu0 0
        %786 = vmatpush.bf16.msra.mxu0 0
        %787 = vmatpush.bf16.msra.mxu0 0
        %788 = vmatpush.bf16.msra.mxu0 0
        %789 = vmatpush.bf16.msra.mxu0 0
        %790 = vmatpush.bf16.msra.mxu0 0
        %791 = vmatpush.bf16.msra.mxu0 %v379
        %792 = vmatmul.bf16.gmra.mxu0 %v279
        %v793 = vpop.f32.mrf.mxu0
        %v794 = vadd.f32 0.0, %v793
        %v795 = vpop.f32.mrf.mxu0
        %796 = vdwg.mxu0
        %v829 = vrot.slane %v391, 2
        %v830 = vrot.slane %v404, 2
        %v831 = vrot.slane %v417, 2
        %v832 = vrot.slane %v430, 2
        %v833 = vrot.slane %v443, 2
        %v834 = vrot.slane %v456, 2
        %v835 = vrot.slane %v469, 2
        %v836 = vrot.slane %v482, 2
        %v837 = vrot.slane %v495, 2
        %v838 = vrot.slane %v508, 2
        %v839 = vrot.slane %v521, 2
        %v840 = vrot.slane %v534, 2
        %v841 = vrot.slane %v547, 2
        %v842 = vrot.slane %v560, 2
        %v843 = vrot.slane %v573, 2
        %v844 = vrot.slane %v586, 2
        %v845 = vrot.slane %v599, 2
        %v846 = vrot.slane %v612, 2
        %v847 = vrot.slane %v625, 2
        %v848 = vrot.slane %v638, 2
        %v849 = vrot.slane %v651, 2
        %v850 = vrot.slane %v664, 2
        %v851 = vrot.slane %v677, 2
        %v852 = vrot.slane %v690, 2
        %v853 = vrot.slane %v703, 2
        %v854 = vrot.slane %v716, 2
        %v855 = vrot.slane %v729, 2
        %v856 = vrot.slane %v742, 2
        %v857 = vrot.slane %v755, 2
        %v858 = vrot.slane %v768, 2
        %v859 = vrot.slane %v781, 2
        %v860 = vrot.slane %v794, 2
        %v893 = vadd.f32 %v391, %v829
        %v894 = vadd.f32 %v404, %v830
        %v895 = vadd.f32 %v417, %v831
        %v896 = vadd.f32 %v430, %v832
        %v897 = vadd.f32 %v443, %v833
        %v898 = vadd.f32 %v456, %v834
        %v899 = vadd.f32 %v469, %v835
        %v900 = vadd.f32 %v482, %v836
        %v901 = vadd.f32 %v495, %v837
        %v902 = vadd.f32 %v508, %v838
        %v903 = vadd.f32 %v521, %v839
        %v904 = vadd.f32 %v534, %v840
        %v905 = vadd.f32 %v547, %v841
        %v906 = vadd.f32 %v560, %v842
        %v907 = vadd.f32 %v573, %v843
        %v908 = vadd.f32 %v586, %v844
        %v909 = vadd.f32 %v599, %v845
        %v910 = vadd.f32 %v612, %v846
        %v911 = vadd.f32 %v625, %v847
        %v912 = vadd.f32 %v638, %v848
        %v913 = vadd.f32 %v651, %v849
        %v914 = vadd.f32 %v664, %v850
        %v915 = vadd.f32 %v677, %v851
        %v916 = vadd.f32 %v690, %v852
        %v917 = vadd.f32 %v703, %v853
        %v918 = vadd.f32 %v716, %v854
        %v919 = vadd.f32 %v729, %v855
        %v920 = vadd.f32 %v742, %v856
        %v921 = vadd.f32 %v755, %v857
        %v922 = vadd.f32 %v768, %v858
        %v923 = vadd.f32 %v781, %v859
        %v924 = vadd.f32 %v794, %v860
        %v925 = vrot.slane %v391, 4
        %v926 = vrot.slane %v404, 4
        %v927 = vrot.slane %v417, 4
        %v928 = vrot.slane %v430, 4
        %v929 = vrot.slane %v443, 4
        %v930 = vrot.slane %v456, 4
        %v931 = vrot.slane %v469, 4
        %v932 = vrot.slane %v482, 4
        %v933 = vrot.slane %v495, 4
        %v934 = vrot.slane %v508, 4
        %v935 = vrot.slane %v521, 4
        %v936 = vrot.slane %v534, 4
        %v937 = vrot.slane %v547, 4
        %v938 = vrot.slane %v560, 4
        %v939 = vrot.slane %v573, 4
        %v940 = vrot.slane %v586, 4
        %v941 = vrot.slane %v599, 4
        %v942 = vrot.slane %v612, 4
        %v943 = vrot.slane %v625, 4
        %v944 = vrot.slane %v638, 4
        %v945 = vrot.slane %v651, 4
        %v946 = vrot.slane %v664, 4
        %v947 = vrot.slane %v677, 4
        %v948 = vrot.slane %v690, 4
        %v949 = vrot.slane %v703, 4
        %v950 = vrot.slane %v716, 4
        %v951 = vrot.slane %v729, 4
        %v952 = vrot.slane %v742, 4
        %v953 = vrot.slane %v755, 4
        %v954 = vrot.slane %v768, 4
        %v955 = vrot.slane %v781, 4
        %v956 = vrot.slane %v794, 4
        %v989 = vadd.f32 %v893, %v925
        %v990 = vadd.f32 %v894, %v926
        %v991 = vadd.f32 %v895, %v927
        %v992 = vadd.f32 %v896, %v928
        %v993 = vadd.f32 %v897, %v929
        %v994 = vadd.f32 %v898, %v930
        %v995 = vadd.f32 %v899, %v931
        %v996 = vadd.f32 %v900, %v932
        %v997 = vadd.f32 %v901, %v933
        %v998 = vadd.f32 %v902, %v934
        %v999 = vadd.f32 %v903, %v935
        %v1000 = vadd.f32 %v904, %v936
        %v1001 = vadd.f32 %v905, %v937
        %v1002 = vadd.f32 %v906, %v938
        %v1003 = vadd.f32 %v907, %v939
        %v1004 = vadd.f32 %v908, %v940
        %v1005 = vadd.f32 %v909, %v941
        %v1006 = vadd.f32 %v910, %v942
        %v1007 = vadd.f32 %v911, %v943
        %v1008 = vadd.f32 %v912, %v944
        %v1009 = vadd.f32 %v913, %v945
        %v1010 = vadd.f32 %v914, %v946
        %v1011 = vadd.f32 %v915, %v947
        %v1012 = vadd.f32 %v916, %v948
        %v1013 = vadd.f32 %v917, %v949
        %v1014 = vadd.f32 %v918, %v950
        %v1015 = vadd.f32 %v919, %v951
        %v1016 = vadd.f32 %v920, %v952
        %v1017 = vadd.f32 %v921, %v953
        %v1018 = vadd.f32 %v922, %v954
        %v1019 = vadd.f32 %v923, %v955
        %v1020 = vadd.f32 %v924, %v956
        %v1021 = vmul.f32 %v989, 0.33333334
        %v1022 = vmul.f32 %v990, 0.33333334
        %v1023 = vmul.f32 %v991, 0.33333334
        %v1024 = vmul.f32 %v992, 0.33333334
        %v1025 = vmul.f32 %v993, 0.33333334
        %v1026 = vmul.f32 %v994, 0.33333334
        %v1027 = vmul.f32 %v995, 0.33333334
        %v1028 = vmul.f32 %v996, 0.33333334
        %v1029 = vmul.f32 %v997, 0.33333334
        %v1030 = vmul.f32 %v998, 0.33333334
        %v1031 = vmul.f32 %v999, 0.33333334
        %v1032 = vmul.f32 %v1000, 0.33333334
        %v1033 = vmul.f32 %v1001, 0.33333334
        %v1034 = vmul.f32 %v1002, 0.33333334
        %v1035 = vmul.f32 %v1003, 0.33333334
        %v1036 = vmul.f32 %v1004, 0.33333334
        %v1037 = vmul.f32 %v1005, 0.33333334
        %v1038 = vmul.f32 %v1006, 0.33333334
        %v1039 = vmul.f32 %v1007, 0.33333334
        %v1040 = vmul.f32 %v1008, 0.33333334
        %v1041 = vmul.f32 %v1009, 0.33333334
        %v1042 = vmul.f32 %v1010, 0.33333334
        %v1043 = vmul.f32 %v1011, 0.33333334
        %v1044 = vmul.f32 %v1012, 0.33333334
        %v1045 = vmul.f32 %v1013, 0.33333334
        %v1046 = vmul.f32 %v1014, 0.33333334
        %v1047 = vmul.f32 %v1015, 0.33333334
        %v1048 = vmul.f32 %v1016, 0.33333334
        %v1049 = vmul.f32 %v1017, 0.33333334
        %v1050 = vmul.f32 %v1018, 0.33333334
        %v1051 = vmul.f32 %v1019, 0.33333334
        %v1052 = vmul.f32 %v1020, 0.33333334
        %v1085 = vrot.slane %v1022, 6
        %v1086 = vrot.slane %v1023, 4
        %v1087 = vrot.slane %v1024, 2
        %v1088 = vrot.slane %v1026, 6
        %v1089 = vrot.slane %v1027, 4
        %v1090 = vrot.slane %v1028, 2
        %v1091 = vrot.slane %v1030, 6
        %v1092 = vrot.slane %v1031, 4
        %v1093 = vrot.slane %v1032, 2
        %v1094 = vrot.slane %v1034, 6
        %v1095 = vrot.slane %v1035, 4
        %v1096 = vrot.slane %v1036, 2
        %v1097 = vrot.slane %v1038, 6
        %v1098 = vrot.slane %v1039, 4
        %v1099 = vrot.slane %v1040, 2
        %v1100 = vrot.slane %v1042, 6
        %v1101 = vrot.slane %v1043, 4
        %v1102 = vrot.slane %v1044, 2
        %v1103 = vrot.slane %v1046, 6
        %v1104 = vrot.slane %v1047, 4
        %v1105 = vrot.slane %v1048, 2
        %v1106 = vrot.slane %v1050, 6
        %v1107 = vrot.slane %v1051, 4
        %v1108 = vrot.slane %v1052, 2
        %v1109 = vsel %vm281, %v1021, %v1085
        %vm1110 = vcmask 1045508
        %v1111 = vsel %vm1110, %v1086, %v1087
        %vm1112 = vcmask 1043456
        %v1113 = vsel %vm1112, %v1109, %v1111
        %v1114 = vsel %vm281, %v1025, %v1088
        %v1115 = vsel %vm1110, %v1089, %v1090
        %v1116 = vsel %vm1112, %v1114, %v1115
        %v1117 = vsel %vm281, %v1029, %v1091
        %v1118 = vsel %vm1110, %v1092, %v1093
        %v1119 = vsel %vm1112, %v1117, %v1118
        %v1120 = vsel %vm281, %v1033, %v1094
        %v1121 = vsel %vm1110, %v1095, %v1096
        %v1122 = vsel %vm1112, %v1120, %v1121
        %v1123 = vsel %vm281, %v1037, %v1097
        %v1124 = vsel %vm1110, %v1098, %v1099
        %v1125 = vsel %vm1112, %v1123, %v1124
        %v1126 = vsel %vm281, %v1041, %v1100
        %v1127 = vsel %vm1110, %v1101, %v1102
        %v1128 = vsel %vm1112, %v1126, %v1127
        %v1129 = vsel %vm281, %v1045, %v1103
        %v1130 = vsel %vm1110, %v1104, %v1105
        %v1131 = vsel %vm1112, %v1129, %v1130
        %v1132 = vsel %vm281, %v1049, %v1106
        %v1133 = vsel %vm1110, %v1107, %v1108
        %v1134 = vsel %vm1112, %v1132, %v1133
        %1143 = vst [vmem:[%s176] sm:$0xff] %v1113
        %1144 = vst [vmem:[%s176 + $0x8] sm:$0xff] %v1116
        %1145 = vst [vmem:[%s176 + $0x10] sm:$0xff] %v1119
        %1146 = vst [vmem:[%s176 + $0x18] sm:$0xff] %v1122
        %1147 = vst [vmem:[%s176 + $0x20] sm:$0xff] %v1125
        %1148 = vst [vmem:[%s176 + $0x28] sm:$0xff] %v1128
        %1149 = vst [vmem:[%s176 + $0x30] sm:$0xff] %v1131
        %1150 = vst [vmem:[%s176 + $0x38] sm:$0xff] %v1134
        %s1151 = sand.u32 %s75, 1
        %s1152 = scalar_lea.sflag [#allocation4], %s1151
        %s1153 = sand.u32 %s75, 1
        %s1154 = smul.addr %s1153, 64
        %s1155 = scalar_lea.vmem [#allocation7], %s1154
        // Predicated region
        $region37: #{tpu_custom_call.1} parent=27 // pred_check
          %p1156 = pneg %p85
        $region38: #{tpu_custom_call.1} parent=27 // pred_check_branch
          %1158 = sbr.rel (%p1156) target = $region40
        $region39: #{tpu_custom_call.1} parent=27 // pred_region
          %s1159 = smul.u32 32, %s20
          %1161 = vsyncadd %s1152, 0
          %s1162 = smul.addr %s1159, 2
          %s1163 = scalar_lea.hbm %s2, %s1162
          %s1165 = sshll.u32 %s1155, 4
          %s1166 = int_to_ptr.vmem [resolvable:$true] %s1165
          %s1167 = sshll.u32 %s1163, 4
          %s1168 = int_to_ptr.hbm [resolvable:$true] %s1167
          %1170 = dma.vmem_to_hbm [thread:$0]  %s1166, 1024, %s1168, %s1152
        $region40: #{tpu_custom_call.1} parent=27 // pred_fallthru
          _
      $region28: #{tpu_custom_call.1} parent=5 // pred_fallthru
        _
      %p1171 = scmp.le.s32.totalorder 2, %s15
      // Predicated region
      $region41: #{tpu_custom_call.1} parent=5 // pred_check
        %p1172 = pneg %p1171
      $region42: #{tpu_custom_call.1} parent=5 // pred_check_branch
        %1174 = sbr.rel (%p1172) target = $region44
      $region43: #{tpu_custom_call.1} parent=5 // pred_region
        %s1175 = ssub.s32 %s15, 2
        // Predicated region
        $region45: #{tpu_custom_call.1} parent=43 // pred_check
          %p1176 = pneg %p91
        $region46: #{tpu_custom_call.1} parent=43 // pred_check_branch
          %1178 = sbr.rel (%p1176) target = $region48
        $region47: #{tpu_custom_call.1} parent=43 // pred_region
          %s1179 = sand.u32 %s76, 1
          %s1180 = scalar_lea.sflag [#allocation4], %s1179
          %s1181 = sand.u32 %s76, 1
          %s1182 = smul.addr %s1181, 64
          %s1183 = scalar_lea.vmem [#allocation7], %s1182
          %1185 = dma.done %s1180, 1024
        $region48: #{tpu_custom_call.1} parent=43 // pred_fallthru
          _
      $region44: #{tpu_custom_call.1} parent=5 // pred_fallthru
        _
    $region6: #{tpu_custom_call.1} parent=1 // loop_footer
      %s19 = sadd.s32 1, %s15
    $region7: #{tpu_custom_call.1} parent=1 // loop_footer_branch
      %14 = sbr.rel target = $region3
    $region8: #{tpu_custom_call.1} parent=1 // loop_exit
      _
    %1186 = vsyncpa [#allocation3], 1
    %s1187 = scalar_lea.sflag [#allocation3], 1
    %1188 = vsyncpa %s1187, 1
    %1189 = vsyncpa [#allocation6], 1
    %1190 = vsyncpa [#allocation4], 1
    %s1191 = scalar_lea.sflag [#allocation4], 1
    %1192 = vsyncpa %s1191, 1

</llo_original>
